<compile_context>
chip_gen: v7x
topology: tpu7x:2x2x1
jax: 0.10.0
libtpu: 0.0.40
codegen_flags: <defaults>
</compile_context>

<pallas_src>
import functools

import jax
import jax.numpy as jnp
from jax.experimental import pallas as pl
from jax.experimental.pallas import tpu as pltpu

F_PAD = 128       # lane-dense padded feature width used for every layer
ROW_TILE = 256    # node-row tile size once N exceeds it
BN_EPS = 1e-5


def _round_up(x, m):
    return (x + m - 1) // m * m


# ----------------------------- Pallas kernel ------------------------------- #

def _sage_kernel(adj_ref, feat_ref, w_ref, gb_ref, bias_ref, out_ref, h_scr,
                 *, n_layers, tm, n_pad, n_real):
    """One grid step = one (layer, node-row-tile) of the SAGE forward.

    adj_ref : (tm, n_pad)          bf16  row tile of the row-normalized adjacency
    feat_ref: (n_pad, F_PAD)       f32   zero-padded input features (resident)
    w_ref   : (2, F_PAD, F_PAD)    bf16  this layer's [W_self, W_neigh], zero-padded
    gb_ref  : (2, F_PAD)           f32   this hidden layer's [gamma; beta]
    bias_ref: (1, F_PAD)           f32   last-layer bias, zero-padded
    out_ref : (tm, F_PAD)          f32   padded output row tile
    h_scr   : (2, n_pad, F_PAD)    f32   ping-pong activations, VMEM-resident
    """
    l = pl.program_id(0)          # layer index          (outer, "arbitrary")
    t = pl.program_id(1)          # node-row tile index  (inner, "arbitrary")
    n_tiles = pl.num_programs(1)
    last = n_layers - 1

    cur = jax.lax.rem(l, 2)       # slot holding the previous layer's activations
    nxt = jax.lax.rem(l + 1, 2)   # slot receiving this layer's activations

    # One-time copy of the padded input features into slot 0 (only grid step (0,0)).
    @pl.when(jnp.logical_and(l == 0, t == 0))
    def _():
        h_scr[0] = feat_ref[...]

    h_prev = h_scr.at[cur]                                    # (n_pad, F_PAD) f32 view
    row0 = pl.multiple_of(t * tm, tm)

    # ---------------- SAGEConv('mean') for this row tile ----------------
    h_full_bf = h_prev[...].astype(jnp.bfloat16)              # all rows, for A @ H
    h_self_bf = h_prev[pl.ds(row0, tm), :].astype(jnp.bfloat16)

    adj_tile = adj_ref[...]                                   # read per step, not hoisted
    h_neigh = jnp.dot(adj_tile, h_full_bf,
                      preferred_element_type=jnp.float32)     # (tm, F_PAD) f32

    # Two K=128 MXU contractions, f32 accumulate (no concat temp).
    conv = (jnp.dot(h_self_bf, w_ref[0], preferred_element_type=jnp.float32)
            + jnp.dot(h_neigh.astype(jnp.bfloat16), w_ref[1],
                      preferred_element_type=jnp.float32))    # (tm, F_PAD) f32

    # ---- last layer: + bias, straight to the tile-blocked output ----
    @pl.when(l == last)
    def _():
        out_ref[...] = (conv + bias_ref[...]).astype(out_ref.dtype)

    # ---- hidden layers: stash conv; BN(batch stats) + ReLU once all tiles landed ----
    @pl.when(l < last)
    def _():
        h_next = h_scr.at[nxt]
        h_next[pl.ds(row0, tm), :] = conv

        @pl.when(t == n_tiles - 1)
        def _():
            x = h_next[...]                                   # (n_pad, F_PAD); padded rows are 0
            inv_n = jnp.float32(1.0 / n_real)
            mean = jnp.sum(x, axis=0, keepdims=True) * inv_n
            var = jnp.sum(x * x, axis=0, keepdims=True) * inv_n - mean * mean
            xhat = (x - mean) * jax.lax.rsqrt(var + BN_EPS)
            y = jnp.maximum(xhat * gb_ref[0:1, :] + gb_ref[1:2, :], 0.0)
            # keep padded rows exactly zero so later layers' BN stats stay exact
            row_ok = jax.lax.broadcasted_iota(jnp.int32, (n_pad, 1), 0) < n_real
            h_next[...] = jnp.where(row_ok, y, 0.0)
            # dropout: eval-mode identity


# ------------------------------ JAX wrapper --------------------------------- #

def sage_forward(params, adj, feat):
    n, in_dim = feat.shape
    n_layers = len(params)
    out_dim = params[-1]["w_self"].shape[1]
    assert in_dim <= F_PAD and out_dim <= F_PAD

    # Row tiling: small graphs -> one tile; large graphs -> ROW_TILE rows per step.
    if n <= ROW_TILE:
        n_pad = _round_up(n, 16)
        tm = n_pad
    else:
        n_pad = _round_up(n, ROW_TILE)
        tm = ROW_TILE
    n_tiles = n_pad // tm

    # ---- pack / pad parameters once, outside the kernel ----
    feat_p = jnp.zeros((n_pad, F_PAD), jnp.float32).at[:n, :in_dim].set(
        feat.astype(jnp.float32))
    adj_p = (jnp.zeros((n_pad, n_pad), jnp.float32).at[:n, :n].set(
        adj.astype(jnp.float32))).astype(jnp.bfloat16)

    w_stack, gb_stack = [], []
    for i, p in enumerate(params):
        in_h, out_h = p["w_self"].shape
        ws = jnp.zeros((F_PAD, F_PAD), jnp.float32).at[:in_h, :out_h].set(p["w_self"])
        wn = jnp.zeros((F_PAD, F_PAD), jnp.float32).at[:in_h, :out_h].set(p["w_neigh"])
        w_stack.append(jnp.stack([ws, wn], axis=0))                # (2, F_PAD, F_PAD)
        if i < n_layers - 1:
            g = jnp.ones((F_PAD,), jnp.float32).at[:out_h].set(p["gamma"])
            b = jnp.zeros((F_PAD,), jnp.float32).at[:out_h].set(p["beta"])
            gb_stack.append(jnp.stack([g, b], axis=0))             # (2, F_PAD)
    w_all = jnp.stack(w_stack, axis=0).astype(jnp.bfloat16)        # (L, 2, F_PAD, F_PAD)
    gb_all = (jnp.stack(gb_stack, axis=0) if gb_stack
              else jnp.zeros((1, 2, F_PAD), jnp.float32))          # (max(L-1,1), 2, F_PAD)
    bias_p = jnp.zeros((1, F_PAD), jnp.float32).at[0, :out_dim].set(params[-1]["bias"])
    gb_last = max(gb_all.shape[0] - 1, 0)

    grid = (n_layers, n_tiles)
    in_specs = [
        pl.BlockSpec((tm, n_pad), lambda l, t: (t, 0)),                    # adj row tiles stream
        pl.BlockSpec((n_pad, F_PAD), lambda l, t: (0, 0)),                 # feat resident
        pl.BlockSpec((None, 2, F_PAD, F_PAD), lambda l, t: (l, 0, 0, 0)),  # per-layer weights
        pl.BlockSpec((None, 2, F_PAD),
                     lambda l, t: (jnp.minimum(l, gb_last), 0, 0)),        # per-layer gamma/beta
        pl.BlockSpec((1, F_PAD), lambda l, t: (0, 0)),                     # last-layer bias
    ]
    out_specs = pl.BlockSpec((tm, F_PAD), lambda l, t: (t, 0))

    # Explicit VMEM budget, re-derived from the working set so it also fits v7x's
    # 64 MiB physical VMEM (v5e's default scoped limit is only 16 MiB).
    vmem_est = (2 * n_pad * F_PAD * 4      # h ping-pong scratch (f32)
                + n_pad * F_PAD * 4        # resident feat
                + n_pad * F_PAD * 2        # bf16 matmul-operand temp
                + 2 * tm * n_pad * 2       # double-buffered adj tiles
                + 2 * 2 * F_PAD * F_PAD * 2  # double-buffered weights
                + 2 * tm * F_PAD * 4       # double-buffered output tiles
                + 16 * F_PAD * 4)          # gamma/beta/bias
    vmem_limit = int(min(max(2 * vmem_est, 8 * 1024 * 1024), 64 * 1024 * 1024))

    flops = n_layers * (2 * n_pad * n_pad * F_PAD       # A @ H
                        + 2 * 2 * n_pad * F_PAD * F_PAD)  # two projections
    bytes_accessed = (n_layers * adj_p.size * 2 + feat_p.size * 4 + w_all.size * 2
                      + gb_all.size * 4 + bias_p.size * 4
                      + n_layers * n_pad * F_PAD * 4)
    cost = pl.CostEstimate(flops=flops,
                           transcendentals=(n_layers - 1) * F_PAD,
                           bytes_accessed=bytes_accessed)

    kernel = functools.partial(_sage_kernel, n_layers=n_layers, tm=tm,
                               n_pad=n_pad, n_real=n)

    out_p = pl.pallas_call(
        kernel,
        out_shape=jax.ShapeDtypeStruct((n_pad, F_PAD), jnp.float32),
        grid_spec=pltpu.PrefetchScalarGridSpec(
            num_scalar_prefetch=0,
            grid=grid,
            in_specs=in_specs,
            out_specs=out_specs,
            scratch_shapes=[pltpu.VMEM((2, n_pad, F_PAD), jnp.float32)],
        ),
        compiler_params=pltpu.CompilerParams(
            # Row-tile axis must be "arbitrary": layer l+1 reads all of layer l's
            # tiles through the per-core h scratch, and BN needs full-batch stats.
            dimension_semantics=("arbitrary", "arbitrary"),
            vmem_limit_bytes=vmem_limit,
        ),
        cost_estimate=cost,
    )(adj_p, feat_p, w_all, gb_all, bias_p)

    return out_p[:n, :out_dim]


# ------------------------------- SAGE params --------------------------------- #

def init_sage_params(key, info_dict):
    """Deterministic param init matching the module's shapes (use_linear=False)."""
    n_layers = info_dict["n_layers"]
    params = []
    for i in range(n_layers):
        in_h = info_dict["hid_dim"] if i > 0 else info_dict["in_dim"]
        out_h = info_dict["hid_dim"] if i < n_layers - 1 else info_dict["out_dim"]
        key, k1, k2, k3 = jax.random.split(key, 4)
        scale = (6.0 / (in_h + out_h)) ** 0.5  # xavier-uniform-like
        layer = {
            "w_self": jax.random.uniform(k1, (in_h, out_h), jnp.float32, -scale, scale),
            "w_neigh": jax.random.uniform(k2, (in_h, out_h), jnp.float32, -scale, scale),
        }
        if i == n_layers - 1:
            # only the last SAGEConv has a bias in the reference model
            layer["bias"] = jax.random.uniform(k3, (out_h,), jnp.float32, -scale, scale)
        else:
            layer["gamma"] = jnp.ones((out_h,), jnp.float32)   # BatchNorm1d default init
            layer["beta"] = jnp.zeros((out_h,), jnp.float32)
        params.append(layer)
    return params


# ---------------------------------- main ------------------------------------ #

if __name__ == "__main__":
    info_dict = {
        "n_layers": 3,
        "in_dim": 32,
        "hid_dim": 32,
        "out_dim": 8,
        "dropout": 0.5,
        "agg_type": "mean",
    }
    N = 64  # number of graph nodes

    key = jax.random.PRNGKey(0)
    k_feat, k_adj, k_param = jax.random.split(key, 3)

    # Node features.
    feat = jax.random.normal(k_feat, (N, info_dict["in_dim"]), jnp.float32)

    # Deterministic random graph -> dense row-normalized adjacency (mean aggregation).
    edges = jax.random.bernoulli(k_adj, p=0.1, shape=(N, N)).astype(jnp.float32)
    edges = edges * (1.0 - jnp.eye(N, dtype=jnp.float32))  # no self loops in neighbor mean
    deg = jnp.sum(edges, axis=1, keepdims=True)
    adj = edges / jnp.maximum(deg, 1.0)  # degree-0 rows aggregate to 0 (DGL convention)

    params = init_sage_params(k_param, info_dict)

    fwd = jax.jit(functools.partial(sage_forward, params))
    out = jax.block_until_ready(fwd(adj, feat))

    assert out.shape == (N, info_dict["out_dim"]), out.shape
    assert jnp.all(jnp.isfinite(out))
    print("KERNEL_OK")
</pallas_src>

<mosaic_0001>
module attributes {stable_mosaic.version = 11 : i64} {
  func.func @_sage_kernel(%arg0: i32, %arg1: i32, %arg2: memref<64x64xbf16, #tpu.memory_space<vmem>>, %arg3: memref<64x128xf32, #tpu.memory_space<vmem>>, %arg4: memref<1x2x128x128xbf16, #tpu.memory_space<vmem>>, %arg5: memref<1x2x128xf32, #tpu.memory_space<vmem>>, %arg6: memref<1x128xf32, #tpu.memory_space<vmem>>, %arg7: memref<64x128xf32, #tpu.memory_space<vmem>>, %arg8: memref<2x64x128xf32, #tpu.memory_space<vmem>>) attributes {dimension_semantics = [#tpu.dimension_semantics<arbitrary>, #tpu.dimension_semantics<arbitrary>], iteration_bounds = array<i64: 3, 1>, scalar_prefetch = 0 : i64, scratch_operands = 1 : i64, tpu.core_type = #tpu.core_type<tc>, window_params = [{transform_indices = @transform_0, window_bounds = array<i64: 64, 64>}, {pipeline_mode = #tpu.pipeline_mode<synchronous>, transform_indices = @transform_1, window_bounds = array<i64: 64, 128>}, {transform_indices = @transform_2, window_bounds = array<i64: 1, 2, 128, 128>}, {transform_indices = @transform_3, window_bounds = array<i64: 1, 2, 128>}, {pipeline_mode = #tpu.pipeline_mode<synchronous>, transform_indices = @transform_4, window_bounds = array<i64: 1, 128>}, {transform_indices = @transform_5, window_bounds = array<i64: 64, 128>}]} {
    %c2_i32 = arith.constant 2 : i32
    %0 = arith.remsi %arg0, %c2_i32 : i32
    %c1_i32 = arith.constant 1 : i32
    %1 = arith.addi %arg0, %c1_i32 : i32
    %c2_i32_0 = arith.constant 2 : i32
    %2 = arith.remsi %1, %c2_i32_0 : i32
    %c0_i32 = arith.constant 0 : i32
    %3 = arith.cmpi eq, %arg0, %c0_i32 : i32
    %c0_i32_1 = arith.constant 0 : i32
    %4 = arith.cmpi eq, %arg1, %c0_i32_1 : i32
    %5 = arith.andi %3, %4 : i1
    %6 = arith.extui %5 : i1 to i32
    %c0_i32_2 = arith.constant 0 : i32
    %7 = arith.cmpi ne, %6, %c0_i32_2 : i32
    scf.if %7 {
      %c0_22 = arith.constant 0 : index
      %c0_23 = arith.constant 0 : index
      %35 = vector.load %arg3[%c0_22, %c0_23] : memref<64x128xf32, #tpu.memory_space<vmem>>, vector<64x128xf32>
      %c0_24 = arith.constant 0 : index
      %c0_25 = arith.constant 0 : index
      %c0_26 = arith.constant 0 : index
      %36 = vector.load %arg8[%c0_24, %c0_25, %c0_26] : memref<2x64x128xf32, #tpu.memory_space<vmem>>, vector<1x64x128xf32>
      %37 = vector.shape_cast %36 : vector<1x64x128xf32> to vector<64x128xf32>
      %38 = vector.shape_cast %35 : vector<64x128xf32> to vector<1x64x128xf32>
      tpu.vector_store %arg8[%c0_24, %c0_25, %c0_26], %38 {strides = array<i32>} : memref<2x64x128xf32, #tpu.memory_space<vmem>>, vector<1x64x128xf32>,
    } else {
    }
    %c64_i32 = arith.constant 64 : i32
    %8 = arith.muli %arg1, %c64_i32 : i32
    %9 = tpu.assume_multiple %8, 64 : i32
    %10 = arith.index_cast %0 : i32 to index
    %c0 = arith.constant 0 : index
    %c0_3 = arith.constant 0 : index
    %11 = vector.load %arg8[%10, %c0, %c0_3] : memref<2x64x128xf32, #tpu.memory_space<vmem>>, vector<1x64x128xf32>
    %12 = vector.shape_cast %11 : vector<1x64x128xf32> to vector<64x128xf32>
    %13 = arith.truncf %12 : vector<64x128xf32> to vector<64x128xbf16>
    %c0_i32_4 = arith.constant 0 : i32
    %c0_i32_5 = arith.constant 0 : i32
    %14 = tpu.memref_slice %arg8[%0, %c0_i32_4, %c0_i32_5] : memref<2x64x128xf32, #tpu.memory_space<vmem>> -> memref<1x64x128xf32, #tpu.memory_space<vmem>>
    %15 = tpu.memref_squeeze %14 : memref<1x64x128xf32, #tpu.memory_space<vmem>> -> memref<64x128xf32, #tpu.memory_space<vmem>>
    %16 = arith.index_cast %9 : i32 to index
    %c0_6 = arith.constant 0 : index
    %17 = vector.load %15[%16, %c0_6] : memref<64x128xf32, #tpu.memory_space<vmem>>, vector<64x128xf32>
    %18 = arith.truncf %17 : vector<64x128xf32> to vector<64x128xbf16>
    %c0_7 = arith.constant 0 : index
    %c0_8 = arith.constant 0 : index
    %19 = vector.load %arg2[%c0_7, %c0_8] : memref<64x64xbf16, #tpu.memory_space<vmem>>, vector<64x64xbf16>
    %cst = arith.constant dense<0.000000e+00> : vector<64x128xf32>
    %20 = tpu.matmul %19, %13, %cst {dimension_numbers = #tpu.dot_dimension_numbers<[1], [0], [0], [1], [0, 0, 1, 1], [], []>} : vector<64x64xbf16>, vector<64x128xbf16>, vector<64x128xf32> -> vector<64x128xf32>
    %c0_9 = arith.constant 0 : index
    %c0_10 = arith.constant 0 : index
    %c0_11 = arith.constant 0 : index
    %c0_12 = arith.constant 0 : index
    %21 = vector.load %arg4[%c0_9, %c0_10, %c0_11, %c0_12] : memref<1x2x128x128xbf16, #tpu.memory_space<vmem>>, vector<1x1x128x128xbf16>
    %22 = vector.shape_cast %21 : vector<1x1x128x128xbf16> to vector<128x128xbf16>
    %cst_13 = arith.constant dense<0.000000e+00> : vector<64x128xf32>
    %23 = tpu.matmul %18, %22, %cst_13 {dimension_numbers = #tpu.dot_dimension_numbers<[1], [0], [0], [1], [0, 0, 1, 1], [], []>} : vector<64x128xbf16>, vector<128x128xbf16>, vector<64x128xf32> -> vector<64x128xf32>
    %24 = arith.truncf %20 : vector<64x128xf32> to vector<64x128xbf16>
    %c0_14 = arith.constant 0 : index
    %c1 = arith.constant 1 : index
    %c0_15 = arith.constant 0 : index
    %c0_16 = arith.constant 0 : index
    %25 = vector.load %arg4[%c0_14, %c1, %c0_15, %c0_16] : memref<1x2x128x128xbf16, #tpu.memory_space<vmem>>, vector<1x1x128x128xbf16>
    %26 = vector.shape_cast %25 : vector<1x1x128x128xbf16> to vector<128x128xbf16>
    %cst_17 = arith.constant dense<0.000000e+00> : vector<64x128xf32>
    %27 = tpu.matmul %24, %26, %cst_17 {dimension_numbers = #tpu.dot_dimension_numbers<[1], [0], [0], [1], [0, 0, 1, 1], [], []>} : vector<64x128xbf16>, vector<128x128xbf16>, vector<64x128xf32> -> vector<64x128xf32>
    %28 = arith.addf %23, %27 : vector<64x128xf32>
    %c2_i32_18 = arith.constant 2 : i32
    %29 = arith.cmpi eq, %arg0, %c2_i32_18 : i32
    %30 = arith.extui %29 : i1 to i32
    %c0_i32_19 = arith.constant 0 : i32
    %31 = arith.cmpi ne, %30, %c0_i32_19 : i32
    scf.if %31 {
      %c0_22 = arith.constant 0 : index
      %c0_23 = arith.constant 0 : index
      %35 = vector.load %arg6[%c0_22, %c0_23] : memref<1x128xf32, #tpu.memory_space<vmem>>, vector<1x128xf32>
      %36 = vector.broadcast %35 : vector<1x128xf32> to vector<64x128xf32>
      %37 = arith.addf %28, %36 : vector<64x128xf32>
      %c0_24 = arith.constant 0 : index
      %c0_25 = arith.constant 0 : index
      %38 = vector.load %arg7[%c0_24, %c0_25] : memref<64x128xf32, #tpu.memory_space<vmem>>, vector<64x128xf32>
      tpu.vector_store %arg7[%c0_24, %c0_25], %37 {strides = array<i32>} : memref<64x128xf32, #tpu.memory_space<vmem>>, vector<64x128xf32>,
    } else {
    }
    %c2_i32_20 = arith.constant 2 : i32
    %32 = arith.cmpi slt, %arg0, %c2_i32_20 : i32
    %33 = arith.extui %32 : i1 to i32
    %c0_i32_21 = arith.constant 0 : i32
    %34 = arith.cmpi ne, %33, %c0_i32_21 : i32
    scf.if %34 {
      %c0_i32_22 = arith.constant 0 : i32
      %c0_i32_23 = arith.constant 0 : i32
      %35 = tpu.memref_slice %arg8[%2, %c0_i32_22, %c0_i32_23] : memref<2x64x128xf32, #tpu.memory_space<vmem>> -> memref<1x64x128xf32, #tpu.memory_space<vmem>>
      %36 = tpu.memref_squeeze %35 : memref<1x64x128xf32, #tpu.memory_space<vmem>> -> memref<64x128xf32, #tpu.memory_space<vmem>>
      %37 = arith.index_cast %9 : i32 to index
      %c0_24 = arith.constant 0 : index
      %38 = vector.load %36[%37, %c0_24] : memref<64x128xf32, #tpu.memory_space<vmem>>, vector<64x128xf32>
      tpu.vector_store %36[%37, %c0_24], %28 {strides = array<i32>} : memref<64x128xf32, #tpu.memory_space<vmem>>, vector<64x128xf32>,
      %c0_i32_25 = arith.constant 0 : i32
      %39 = arith.cmpi eq, %arg1, %c0_i32_25 : i32
      %40 = arith.extui %39 : i1 to i32
      %c0_i32_26 = arith.constant 0 : i32
      %41 = arith.cmpi ne, %40, %c0_i32_26 : i32
      scf.if %41 {
        %42 = arith.index_cast %2 : i32 to index
        %c0_27 = arith.constant 0 : index
        %c0_28 = arith.constant 0 : index
        %43 = vector.load %arg8[%42, %c0_27, %c0_28] : memref<2x64x128xf32, #tpu.memory_space<vmem>>, vector<1x64x128xf32>
        %44 = vector.shape_cast %43 : vector<1x64x128xf32> to vector<64x128xf32>
        %cst_29 = arith.constant dense<0.000000e+00> : vector<128xf32>
        %45 = vector.multi_reduction <add>, %44, %cst_29 [0] : vector<64x128xf32> to vector<128xf32>
        %46 = vector.shape_cast %45 : vector<128xf32> to vector<1x128xf32>
        %cst_30 = arith.constant 1.562500e-02 : f32
        %47 = vector.broadcast %cst_30 : f32 to vector<1x128xf32>
        %48 = arith.mulf %46, %47 : vector<1x128xf32>
        %49 = arith.mulf %44, %44 : vector<64x128xf32>
        %cst_31 = arith.constant dense<0.000000e+00> : vector<128xf32>
        %50 = vector.multi_reduction <add>, %49, %cst_31 [0] : vector<64x128xf32> to vector<128xf32>
        %51 = vector.shape_cast %50 : vector<128xf32> to vector<1x128xf32>
        %cst_32 = arith.constant 1.562500e-02 : f32
        %52 = vector.broadcast %cst_32 : f32 to vector<1x128xf32>
        %53 = arith.mulf %51, %52 : vector<1x128xf32>
        %54 = arith.mulf %48, %48 : vector<1x128xf32>
        %55 = arith.subf %53, %54 : vector<1x128xf32>
        %56 = vector.broadcast %48 : vector<1x128xf32> to vector<64x128xf32>
        %57 = arith.subf %44, %56 : vector<64x128xf32>
        %cst_33 = arith.constant 9.99999974E-6 : f32
        %58 = vector.broadcast %cst_33 : f32 to vector<1x128xf32>
        %59 = arith.addf %55, %58 : vector<1x128xf32>
        %60 = math.rsqrt %59 : vector<1x128xf32>
        %61 = vector.broadcast %60 : vector<1x128xf32> to vector<64x128xf32>
        %62 = arith.mulf %57, %61 : vector<64x128xf32>
        %c0_34 = arith.constant 0 : index
        %c0_35 = arith.constant 0 : index
        %c0_36 = arith.constant 0 : index
        %63 = vector.load %arg5[%c0_34, %c0_35, %c0_36] : memref<1x2x128xf32, #tpu.memory_space<vmem>>, vector<1x1x128xf32>
        %64 = vector.shape_cast %63 : vector<1x1x128xf32> to vector<1x128xf32>
        %65 = vector.broadcast %64 : vector<1x128xf32> to vector<64x128xf32>
        %66 = arith.mulf %62, %65 : vector<64x128xf32>
        %c0_37 = arith.constant 0 : index
        %c1_38 = arith.constant 1 : index
        %c0_39 = arith.constant 0 : index
        %67 = vector.load %arg5[%c0_37, %c1_38, %c0_39] : memref<1x2x128xf32, #tpu.memory_space<vmem>>, vector<1x1x128xf32>
        %68 = vector.shape_cast %67 : vector<1x1x128xf32> to vector<1x128xf32>
        %69 = vector.broadcast %68 : vector<1x128xf32> to vector<64x128xf32>
        %70 = arith.addf %66, %69 : vector<64x128xf32>
        %cst_40 = arith.constant 0.000000e+00 : f32
        %71 = vector.broadcast %cst_40 : f32 to vector<64x128xf32>
        %72 = arith.maximumf %70, %71 : vector<64x128xf32>
        %73 = tpu.iota {dimensions = array<i32: 0>} : vector<64x1xi32>
        %c64_i32_41 = arith.constant 64 : i32
        %74 = vector.broadcast %c64_i32_41 : i32 to vector<64x1xi32>
        %75 = arith.cmpi slt, %73, %74 : vector<64x1xi32>
        %cst_42 = arith.constant 0.000000e+00 : f32
        %76 = vector.shape_cast %75 : vector<64x1xi1> to vector<64x1xi1>
        %77 = vector.broadcast %76 : vector<64x1xi1> to vector<64x128xi1>
        %78 = vector.broadcast %cst_42 : f32 to vector<64x128xf32>
        %79 = arith.select %77, %72, %78 : vector<64x128xi1>, vector<64x128xf32>
        %80 = arith.index_cast %2 : i32 to index
        %c0_43 = arith.constant 0 : index
        %c0_44 = arith.constant 0 : index
        %81 = vector.load %arg8[%80, %c0_43, %c0_44] : memref<2x64x128xf32, #tpu.memory_space<vmem>>, vector<1x64x128xf32>
        %82 = vector.shape_cast %81 : vector<1x64x128xf32> to vector<64x128xf32>
        %83 = vector.shape_cast %79 : vector<64x128xf32> to vector<1x64x128xf32>
        tpu.vector_store %arg8[%80, %c0_43, %c0_44], %83 {strides = array<i32>} : memref<2x64x128xf32, #tpu.memory_space<vmem>>, vector<1x64x128xf32>,
      } else {
      }
    } else {
    }
    return
  }
  func.func @transform_0(%arg0: i32, %arg1: i32) -> (i32, i32) {
    %c0_i32 = arith.constant 0 : i32
    %c0_i32_0 = arith.constant 0 : i32
    return %arg1, %c0_i32 : i32, i32
  }
  func.func @transform_1(%arg0: i32, %arg1: i32) -> (i32, i32) {
    %c0_i32 = arith.constant 0 : i32
    %c0_i32_0 = arith.constant 0 : i32
    %c0_i32_1 = arith.constant 0 : i32
    return %c0_i32, %c0_i32_0 : i32, i32
  }
  func.func @transform_2(%arg0: i32, %arg1: i32) -> (i32, i32, i32, i32) {
    %c0_i32 = arith.constant 0 : i32
    %c0_i32_0 = arith.constant 0 : i32
    %c0_i32_1 = arith.constant 0 : i32
    %c0_i32_2 = arith.constant 0 : i32
    return %arg0, %c0_i32, %c0_i32_0, %c0_i32_1 : i32, i32, i32, i32
  }
  func.func @transform_3(%arg0: i32, %arg1: i32) -> (i32, i32, i32) {
    %c1_i32 = arith.constant 1 : i32
    %0 = arith.minsi %arg0, %c1_i32 : i32
    %c0_i32 = arith.constant 0 : i32
    %c0_i32_0 = arith.constant 0 : i32
    %c0_i32_1 = arith.constant 0 : i32
    return %0, %c0_i32, %c0_i32_0 : i32, i32, i32
  }
  func.func @transform_4(%arg0: i32, %arg1: i32) -> (i32, i32) {
    %c0_i32 = arith.constant 0 : i32
    %c0_i32_0 = arith.constant 0 : i32
    %c0_i32_1 = arith.constant 0 : i32
    return %c0_i32, %c0_i32_0 : i32, i32
  }
  func.func @transform_5(%arg0: i32, %arg1: i32) -> (i32, i32) {
    %c0_i32 = arith.constant 0 : i32
    %c0_i32_0 = arith.constant 0 : i32
    return %arg1, %c0_i32 : i32, i32
  }
}

</mosaic_0001>

<llo_original>
// kernel: sage_forward.1
$region0: #{sage_forward.1}
  #allocation0 [shape = 'u32[]', space=smem, size = 0x4, offset = 0x4, fixed_abs, tag = 'smem constant byte address 0x4 - core index']
  #allocation1 [shape = 'u32[144,128]{1,0:T(1,128)}', space=vmem, size = 0x12000, scoped, tag = 'internal scratch']
  #allocation2 [shape = 'f32[2,64,128]{2,1,0:T(8,128)}', space=vmem, size = 0x10000, scoped, tag = 'scratch operand']
  %s0 = inlined_call_operand.vmem [shape: bf16[64,64], index: 0, kind: input, shape index: {}]
  %s1 = inlined_call_operand.vmem [shape: f32[64,128], index: 1, kind: input, shape index: {}]
  %s2 = inlined_call_operand.vmem [shape: bf16[3,2,128,128], index: 2, kind: input, shape index: {}]
  %s3 = inlined_call_operand.vmem [shape: f32[2,2,128], index: 3, kind: input, shape index: {}]
  %s4 = inlined_call_operand.vmem [shape: f32[1,128], index: 4, kind: input, shape index: {}]
  %s5 = inlined_call_operand.vmem [shape: f32[64,128], index: 5, kind: output, shape index: {}]
  %s6 = sld [smem:[#allocation0]]
  $region69: #{sage_forward.1} parent=0
    _
  %s8 = ssub.s32 1, %s6
  %s9 = scalar_select 0, %s8, %s6
  loop: start=0, step=1, limit=5
  $region2: #{sage_forward.1} parent=0 // loop_pre_header
    _
  $region3: #{sage_forward.1} parent=0 // loop_header
    %s11 = sphi 0, %s15
    %p12 = scmp.ge.s32.totalorder %s11, 5
    %s18 = sphi 0, %s30
    %s19 = sphi 0, %s26
    %s20 = sphi 0, %s18
    %s21 = sphi 0, %s19
    %s22 = sphi 0, %s20
    %s23 = sphi 0, %s21
    %s33 = sphi 0, %s35
    %s36 = sphi 0, %s33
    %s37 = sphi 0, %s36
    %s53 = sphi 0, %s37
    %s57 = sphi 0, %s57
    %s59 = sphi 0, %s57
    %s60 = sphi 0, %s59
    %s74 = sphi 0, %s60
    %s80 = sphi 0, %s82
    %s83 = sphi 0, %s80
    %s84 = sphi 0, %s83
    %s100 = sphi 0, %s84
    %s110 = sphi 0, %s112
    %s113 = sphi 0, %s110
    %s114 = sphi 0, %s113
    %s130 = sphi 0, %s114
    %s134 = sphi 0, %s134
    %s136 = sphi 0, %s134
    %s137 = sphi 0, %s136
    %s151 = sphi 0, %s137
    %s157 = sphi 0, %s159
    %s160 = sphi 0, %s157
    %s161 = sphi 0, %s160
    %s177 = sphi 0, %s161
  $region4: #{sage_forward.1} parent=0 // loop_header_branch
    %14 = sbr.rel (%p12) target = $region8
  $region5: #{sage_forward.1} parent=0 // loop_body
    %s16 = ssub.s32 %s11, 1
    %s17 = ssub.s32 %s11, 2
    %s24 = sadd.s32 1, %s19
    %p25 = scmp.ge.s32.totalorder %s24, 1
    %s26 = scalar_select %p25, 0, %s24
    %s27 = sadd.s32 1, %s18
    %s28 = scalar_select %p25, %s27, %s18
    %p29 = scmp.ge.s32.totalorder %s28, 3
    %s30 = scalar_select %p29, 0, %s28
    %s31 = ssub.s32 %s19, %s26
    %p32 = scmp.eq.s32.totalorder %s31, 0
    %s34 = sadd.s32 %s33, 1
    %s35 = scalar_select %p32, %s33, %s34
    %p38 = pneg %p32
    %p39 = scmp.eq.s32.totalorder %s11, 2
    %p40 = por %p38, %p39
    %p41 = scmp.ne.s32.totalorder %s33, %s36
    %p42 = scmp.eq.s32.totalorder %s11, 0
    %p43 = por %p41, %p42
    %p44 = scmp.ne.s32.totalorder %s33, %s36
    %p45 = scmp.eq.s32.totalorder %s16, 2
    %p46 = por %p44, %p45
    %p47 = scmp.ne.s32.totalorder %s36, %s37
    %p48 = scmp.eq.s32.totalorder %s16, 0
    %p49 = por %p47, %p48
    %p50 = scmp.ne.s32.totalorder %s36, %s37
    %p51 = scmp.eq.s32.totalorder %s17, 2
    %p52 = por %p50, %p51
    %p54 = scmp.ne.s32.totalorder %s37, %s53
    %p55 = scmp.eq.s32.totalorder %s17, 0
    %p56 = por %p54, %p55
    %s58 = sadd.s32 %s57, 1
    %p61 = scmp.eq.s32.totalorder %s11, 2
    %p62 = scmp.ne.s32.totalorder %s57, %s59
    %p63 = scmp.eq.s32.totalorder %s11, 0
    %p64 = por %p62, %p63
    %p65 = scmp.ne.s32.totalorder %s57, %s59
    %p66 = scmp.eq.s32.totalorder %s16, 2
    %p67 = por %p65, %p66
    %p68 = scmp.ne.s32.totalorder %s59, %s60
    %p69 = scmp.eq.s32.totalorder %s16, 0
    %p70 = por %p68, %p69
    %p71 = scmp.ne.s32.totalorder %s59, %s60
    %p72 = scmp.eq.s32.totalorder %s17, 2
    %p73 = por %p71, %p72
    %p75 = scmp.ne.s32.totalorder %s60, %s74
    %p76 = scmp.eq.s32.totalorder %s17, 0
    %p77 = por %p75, %p76
    %s78 = ssub.s32 %s18, %s30
    %p79 = scmp.eq.s32.totalorder %s78, 0
    %s81 = sadd.s32 %s80, 1
    %s82 = scalar_select %p79, %s80, %s81
    %p85 = pneg %p79
    %p86 = scmp.eq.s32.totalorder %s11, 2
    %p87 = por %p85, %p86
    %p88 = scmp.ne.s32.totalorder %s80, %s83
    %p89 = scmp.eq.s32.totalorder %s11, 0
    %p90 = por %p88, %p89
    %p91 = scmp.ne.s32.totalorder %s80, %s83
    %p92 = scmp.eq.s32.totalorder %s16, 2
    %p93 = por %p91, %p92
    %p94 = scmp.ne.s32.totalorder %s83, %s84
    %p95 = scmp.eq.s32.totalorder %s16, 0
    %p96 = por %p94, %p95
    %p97 = scmp.ne.s32.totalorder %s83, %s84
    %p98 = scmp.eq.s32.totalorder %s17, 2
    %p99 = por %p97, %p98
    %p101 = scmp.ne.s32.totalorder %s84, %s100
    %p102 = scmp.eq.s32.totalorder %s17, 0
    %p103 = por %p101, %p102
    %p104 = scmp.lt.s32.totalorder %s18, 1
    %s105 = scalar_select %p104, %s18, 1
    %p106 = scmp.lt.s32.totalorder %s30, 1
    %s107 = scalar_select %p106, %s30, 1
    %s108 = ssub.s32 %s105, %s107
    %p109 = scmp.eq.s32.totalorder %s108, 0
    %s111 = sadd.s32 %s110, 1
    %s112 = scalar_select %p109, %s110, %s111
    %p115 = pneg %p109
    %p116 = scmp.eq.s32.totalorder %s11, 2
    %p117 = por %p115, %p116
    %p118 = scmp.ne.s32.totalorder %s110, %s113
    %p119 = scmp.eq.s32.totalorder %s11, 0
    %p120 = por %p118, %p119
    %p121 = scmp.ne.s32.totalorder %s110, %s113
    %p122 = scmp.eq.s32.totalorder %s16, 2
    %p123 = por %p121, %p122
    %p124 = scmp.ne.s32.totalorder %s113, %s114
    %p125 = scmp.eq.s32.totalorder %s16, 0
    %p126 = por %p124, %p125
    %p127 = scmp.ne.s32.totalorder %s113, %s114
    %p128 = scmp.eq.s32.totalorder %s17, 2
    %p129 = por %p127, %p128
    %p131 = scmp.ne.s32.totalorder %s114, %s130
    %p132 = scmp.eq.s32.totalorder %s17, 0
    %p133 = por %p131, %p132
    %s135 = sadd.s32 %s134, 1
    %p138 = scmp.eq.s32.totalorder %s11, 2
    %p139 = scmp.ne.s32.totalorder %s134, %s136
    %p140 = scmp.eq.s32.totalorder %s11, 0
    %p141 = por %p139, %p140
    %p142 = scmp.ne.s32.totalorder %s134, %s136
    %p143 = scmp.eq.s32.totalorder %s16, 2
    %p144 = por %p142, %p143
    %p145 = scmp.ne.s32.totalorder %s136, %s137
    %p146 = scmp.eq.s32.totalorder %s16, 0
    %p147 = por %p145, %p146
    %p148 = scmp.ne.s32.totalorder %s136, %s137
    %p149 = scmp.eq.s32.totalorder %s17, 2
    %p150 = por %p148, %p149
    %p152 = scmp.ne.s32.totalorder %s137, %s151
    %p153 = scmp.eq.s32.totalorder %s17, 0
    %p154 = por %p152, %p153
    %s155 = ssub.s32 %s19, %s26
    %p156 = scmp.eq.s32.totalorder %s155, 0
    %s158 = sadd.s32 %s157, 1
    %s159 = scalar_select %p156, %s157, %s158
    %p162 = pneg %p156
    %p163 = scmp.eq.s32.totalorder %s11, 2
    %p164 = por %p162, %p163
    %p165 = scmp.ne.s32.totalorder %s157, %s160
    %p166 = scmp.eq.s32.totalorder %s11, 0
    %p167 = por %p165, %p166
    %p168 = scmp.ne.s32.totalorder %s157, %s160
    %p169 = scmp.eq.s32.totalorder %s16, 2
    %p170 = por %p168, %p169
    %p171 = scmp.ne.s32.totalorder %s160, %s161
    %p172 = scmp.eq.s32.totalorder %s16, 0
    %p173 = por %p171, %p172
    %p174 = scmp.ne.s32.totalorder %s160, %s161
    %p175 = scmp.eq.s32.totalorder %s17, 2
    %p176 = por %p174, %p175
    %p178 = scmp.ne.s32.totalorder %s161, %s177
    %p179 = scmp.eq.s32.totalorder %s17, 0
    %p180 = por %p178, %p179
    %p181 = scmp.le.s32.totalorder 1, %s11
    %p182 = scmp.lt.s32.totalorder %s11, 4
    %p183 = pnand %p181, %p182
    %p184 = pneg %p183
    // Predicated region
    $region9: #{sage_forward.1} parent=5 // pred_check
      _
    $region10: #{sage_forward.1} parent=5 // pred_check_branch
      %186 = sbr.rel (%p183) target = $region12
    $region11: #{sage_forward.1} parent=5 // pred_region
      %s187 = ssub.s32 %s11, 1
      // Predicated region
      $region13: #{sage_forward.1} parent=11 // pred_check
        %p188 = pneg %p49
      $region14: #{sage_forward.1} parent=11 // pred_check_branch
        %190 = sbr.rel (%p188) target = $region16
      $region15: #{sage_forward.1} parent=11 // pred_region
        %s191 = smul.u32 8, %s21
        %p192 = scmp.lt.s32.totalorder %s191, 7
        %s193 = scalar_select %p192, %s191, 7
        %s194 = smul.addr %s193, 4
        %s195 = scalar_lea.vmem %s0, %s194
        %s196 = smul.u32 8, %s21
      $region16: #{sage_forward.1} parent=11 // pred_fallthru
        _
      // Predicated region
      $region17: #{sage_forward.1} parent=11 // pred_check
        %p197 = pneg %p70
      $region18: #{sage_forward.1} parent=11 // pred_check_branch
        %199 = sbr.rel (%p197) target = $region20
      $region19: #{sage_forward.1} parent=11 // pred_region
        _
      $region20: #{sage_forward.1} parent=11 // pred_fallthru
        _
      // Predicated region
      $region21: #{sage_forward.1} parent=11 // pred_check
        %p200 = pneg %p147
      $region22: #{sage_forward.1} parent=11 // pred_check_branch
        %202 = sbr.rel (%p200) target = $region24
      $region23: #{sage_forward.1} parent=11 // pred_region
        _
      $region24: #{sage_forward.1} parent=11 // pred_fallthru
        _
    $region12: #{sage_forward.1} parent=5 // pred_fallthru
      _
    %p203 = scmp.lt.s32.totalorder %s11, 3
    // Predicated region
    $region25: #{sage_forward.1} parent=5 // pred_check
      %p204 = pneg %p203
    $region26: #{sage_forward.1} parent=5 // pred_check_branch
      %206 = sbr.rel (%p204) target = $region28
    $region27: #{sage_forward.1} parent=5 // pred_region
      // Predicated region
      $region29: #{sage_forward.1} parent=27 // pred_check
        %p207 = pneg %p90
      $region30: #{sage_forward.1} parent=27 // pred_check_branch
        %209 = sbr.rel (%p207) target = $region32
      $region31: #{sage_forward.1} parent=27 // pred_region
        %p210 = scmp.lt.s32.totalorder %s18, 2
        %s211 = scalar_select %p210, %s18, 2
        %s212 = smul.addr %s211, 32
        %s213 = smul.addr %s212, 4
        %s214 = scalar_lea.vmem %s2, %s213
      $region32: #{sage_forward.1} parent=27 // pred_fallthru
        _
      // Predicated region
      $region33: #{sage_forward.1} parent=27 // pred_check
        %p215 = pneg %p120
      $region34: #{sage_forward.1} parent=27 // pred_check_branch
        %217 = sbr.rel (%p215) target = $region36
      $region35: #{sage_forward.1} parent=27 // pred_region
        %p218 = scmp.lt.s32.totalorder %s18, 1
        %s219 = scalar_select %p218, %s18, 1
        %p220 = scmp.lt.s32.totalorder %s219, 1
        %s221 = scalar_select %p220, %s219, 1
        %s222 = smul.addr %s221, 2
        %s223 = scalar_lea.vmem %s3, %s222
        %p224 = scmp.lt.s32.totalorder %s18, 1
        %s225 = scalar_select %p224, %s18, 1
      $region36: #{sage_forward.1} parent=27 // pred_fallthru
        _
    $region28: #{sage_forward.1} parent=5 // pred_fallthru
      _
    %p226 = scmp.le.s32.totalorder 1, %s11
    %p227 = scmp.lt.s32.totalorder %s11, 4
    %p228 = pnand %p226, %p227
    %p229 = pneg %p228
    // Predicated region
    $region37: #{sage_forward.1} parent=5 // pred_check
      _
    $region38: #{sage_forward.1} parent=5 // pred_check_branch
      %231 = sbr.rel (%p228) target = $region40
    $region39: #{sage_forward.1} parent=5 // pred_region
      %s232 = ssub.s32 %s11, 1
      %s233 = smul.u32 8, %s21
      %p234 = scmp.lt.s32.totalorder %s233, 7
      %s235 = scalar_select %p234, %s233, 7
      %s236 = smul.addr %s235, 4
      %s237 = scalar_lea.vmem %s0, %s236
      %p238 = pneg %p49
      %p239 = pneg %p46
      %p240 = pneg %p70
      %p241 = pneg %p67
      %p242 = scmp.lt.s32.totalorder %s20, 2
      %s243 = scalar_select %p242, %s20, 2
      %s244 = smul.addr %s243, 32
      %s245 = smul.addr %s244, 4
      %s246 = scalar_lea.vmem %s2, %s245
      %p247 = pneg %p96
      %p248 = pneg %p93
      %p249 = scmp.lt.s32.totalorder %s20, 1
      %s250 = scalar_select %p249, %s20, 1
      %p251 = scmp.lt.s32.totalorder %s250, 1
      %s252 = scalar_select %p251, %s250, 1
      %s253 = smul.addr %s252, 2
      %s254 = scalar_lea.vmem %s3, %s253
      %p255 = pneg %p126
      %p256 = pneg %p123
      %p257 = pneg %p147
      %p258 = pneg %p144
      %p259 = pneg %p173
      %p260 = pneg %p170
      %s261 = smul.u32 8, %s21
      %p262 = scmp.lt.s32.totalorder %s261, 7
      %s263 = scalar_select %p262, %s261, 7
      %s264 = smul.addr %s263, 8
      %s265 = scalar_lea.vmem %s5, %s264
      %s266 = smul.u32 8, %s21
      %p267 = scmp.lt.s32.totalorder %s266, 7
      %s268 = scalar_select %p267, %s266, 7
      %s269 = smul.addr %s268, 4
      %s270 = scalar_lea.vmem %s0, %s269
      %s271 = smul.u32 8, %s21
      %p272 = scmp.lt.s32.totalorder %s20, 2
      %s273 = scalar_select %p272, %s20, 2
      %s274 = smul.addr %s273, 32
      %s275 = smul.addr %s274, 4
      %s276 = scalar_lea.vmem %s2, %s275
      %p277 = scmp.lt.s32.totalorder %s20, 1
      %s278 = scalar_select %p277, %s20, 1
      %p279 = scmp.lt.s32.totalorder %s278, 1
      %s280 = scalar_select %p279, %s278, 1
      %s281 = smul.addr %s280, 2
      %s282 = scalar_lea.vmem %s3, %s281
      %p283 = scmp.lt.s32.totalorder %s20, 1
      %s284 = scalar_select %p283, %s20, 1
      %s285 = smul.u32 8, %s21
      %p286 = scmp.lt.s32.totalorder %s285, 7
      %s287 = scalar_select %p286, %s285, 7
      %s288 = smul.addr %s287, 8
      %s289 = scalar_lea.vmem %s5, %s288
      %s290 = smul.u32 8, %s21
      %p292 = scmp.lt.s32.totalorder %s20, 0
      %s293 = ssub.s32 0, %s20
      %s294 = scalar_select %p292, %s293, %s20
      %s295 = sand.u32 %s294, 1
      %s296 = ssub.s32 0, %s295
      %s297 = scalar_select %p292, %s296, %s295
      %s298 = sadd.s32 %s20, 1
      %p299 = scmp.lt.s32.totalorder %s298, 0
      %s300 = ssub.s32 0, %s298
      %s301 = scalar_select %p299, %s300, %s298
      %s302 = sand.u32 %s301, 1
      %s303 = ssub.s32 0, %s302
      %s304 = scalar_select %p299, %s303, %s302
      %p305 = scmp.eq.s32.totalorder %s20, 0
      %p306 = scmp.eq.s32.totalorder %s21, 0
      %p307 = pnand %p305, %p306
      %p308 = pneg %p307
      // Predicated region
      $region41: #{sage_forward.1} parent=39 // pred_check
        _
      $region42: #{sage_forward.1} parent=39 // pred_check_branch
        %310 = sbr.rel (%p307) target = $region44
      $region43: #{sage_forward.1} parent=39 // pred_region
        %v311 = vld [vmem:[%s1] sm:$0xff]
        %v312 = vld [vmem:[%s1 + $0x8] sm:$0xff]
        %v313 = vld [vmem:[%s1 + $0x10] sm:$0xff]
        %v314 = vld [vmem:[%s1 + $0x18] sm:$0xff]
        %v315 = vld [vmem:[%s1 + $0x20] sm:$0xff]
        %v316 = vld [vmem:[%s1 + $0x28] sm:$0xff]
        %v317 = vld [vmem:[%s1 + $0x30] sm:$0xff]
        %v318 = vld [vmem:[%s1 + $0x38] sm:$0xff]
        %319 = vst [vmem:[#allocation2] sm:$0xff] %v311
        %320 = vst [vmem:[#allocation2 + $0x8] sm:$0xff] %v312
        %321 = vst [vmem:[#allocation2 + $0x10] sm:$0xff] %v313
        %322 = vst [vmem:[#allocation2 + $0x18] sm:$0xff] %v314
        %323 = vst [vmem:[#allocation2 + $0x20] sm:$0xff] %v315
        %324 = vst [vmem:[#allocation2 + $0x28] sm:$0xff] %v316
        %325 = vst [vmem:[#allocation2 + $0x30] sm:$0xff] %v317
        %326 = vst [vmem:[#allocation2 + $0x38] sm:$0xff] %v318
      $region44: #{sage_forward.1} parent=39 // pred_fallthru
        _
      %s327 = smul.u32 %s21, 64
      %s328 = smul.u32 %s297, 64
      %s329 = scalar_lea.vmem [#allocation2], %s328
      %v330 = vld [vmem:[%s329] sm:$0xff]
      %v331 = vld [vmem:[%s329 + $0x8] sm:$0xff]
      %v332 = vld [vmem:[%s329 + $0x10] sm:$0xff]
      %v333 = vld [vmem:[%s329 + $0x18] sm:$0xff]
      %v334 = vld [vmem:[%s329 + $0x20] sm:$0xff]
      %v335 = vld [vmem:[%s329 + $0x28] sm:$0xff]
      %v336 = vld [vmem:[%s329 + $0x30] sm:$0xff]
      %v337 = vld [vmem:[%s329 + $0x38] sm:$0xff]
      %v338 = vpack.c.bf16 %v331, %v330
      %v339 = vpack.c.bf16 %v333, %v332
      %v340 = vpack.c.bf16 %v335, %v334
      %v341 = vpack.c.bf16 %v337, %v336
      %s342 = scalar_lea.vmem %s329, %s327 [#allocation2]
      %v343 = vld [vmem:[%s342] sm:$0xff]
      %v344 = vld [vmem:[%s342 + $0x8] sm:$0xff]
      %v345 = vld [vmem:[%s342 + $0x10] sm:$0xff]
      %v346 = vld [vmem:[%s342 + $0x18] sm:$0xff]
      %v347 = vld [vmem:[%s342 + $0x20] sm:$0xff]
      %v348 = vld [vmem:[%s342 + $0x28] sm:$0xff]
      %v349 = vld [vmem:[%s342 + $0x30] sm:$0xff]
      %v350 = vld [vmem:[%s342 + $0x38] sm:$0xff]
      %v351 = vpack.c.bf16 %v344, %v343
      %v352 = vpack.c.bf16 %v346, %v345
      %v353 = vpack.c.bf16 %v348, %v347
      %v354 = vpack.c.bf16 %v350, %v349
      %v355 = vld [vmem:[%s270] sm:$0xf]
      %v356 = vld [vmem:[%s270 + $0x4] sm:$0xf]
      %v357 = vld [vmem:[%s270 + $0x8] sm:$0xf]
      %v358 = vld [vmem:[%s270 + $0xc] sm:$0xf]
      %v359 = vld [vmem:[%s270 + $0x10] sm:$0xf]
      %v360 = vld [vmem:[%s270 + $0x14] sm:$0xf]
      %v361 = vld [vmem:[%s270 + $0x18] sm:$0xf]
      %v362 = vld [vmem:[%s270 + $0x1c] sm:$0xf]
      %v371 = vunpack.c.l.b16 %v355
      %v372 = vunpack.c.l.b16 %v356
      %v373 = vunpack.c.l.b16 %v357
      %v374 = vunpack.c.l.b16 %v358
      %v375 = vunpack.c.l.b16 %v359
      %v376 = vunpack.c.l.b16 %v360
      %v377 = vunpack.c.l.b16 %v361
      %v378 = vunpack.c.l.b16 %v362
      %v379 = vpack.c.b16 %v372, %v371
      %v380 = vpack.c.b16 %v374, %v373
      %v381 = vpack.c.b16 %v376, %v375
      %v382 = vpack.c.b16 %v378, %v377
      %vm383 = vcmask 523264
      %v385 = vsel %vm383, %v379, 0
      %v388 = vsel %vm383, %v380, 0
      %v391 = vsel %vm383, %v381, 0
      %v394 = vsel %vm383, %v382, 0
      %396 = vmatprep.subr.bf16.mxu0 0
      %397 = vmatpush1.bf16.msra.mxu0 %v338
      %398 = vmatprep.subr.bf16.mxu0 0
      %399 = vmatpush1.bf16.msra.mxu0 %v339
      %400 = vmatprep.subr.bf16.mxu0 0
      %401 = vmatpush1.bf16.msra.mxu0 %v340
      %402 = vmatprep.subr.bf16.mxu0 0
      %403 = vmatpush1.bf16.msra.mxu0 %v341
      %404 = vmatprep.subr.bf16.mxu0 0
      %405 = vmatpush1.bf16.msra.mxu0 0
      %406 = vmatprep.subr.bf16.mxu0 0
      %407 = vmatpush1.bf16.msra.mxu0 0
      %408 = vmatprep.subr.bf16.mxu0 0
      %409 = vmatpush1.bf16.msra.mxu0 0
      %410 = vmatprep.subr.bf16.mxu0 0
      %411 = vmatpush1.bf16.msra.mxu0 0
      %412 = vmatprep.subr.bf16.mxu0 0
      %413 = vmatpush1.bf16.msra.mxu0 0
      %414 = vmatprep.subr.bf16.mxu0 0
      %415 = vmatpush1.bf16.msra.mxu0 0
      %416 = vmatprep.subr.bf16.mxu0 0
      %417 = vmatpush1.bf16.msra.mxu0 0
      %418 = vmatprep.subr.bf16.mxu0 0
      %419 = vmatpush1.bf16.msra.mxu0 0
      %420 = vmatprep.subr.bf16.mxu0 0
      %421 = vmatpush1.bf16.msra.mxu0 0
      %422 = vmatprep.subr.bf16.mxu0 0
      %423 = vmatpush1.bf16.msra.mxu0 0
      %424 = vmatprep.subr.bf16.mxu0 0
      %425 = vmatpush1.bf16.msra.mxu0 0
      %426 = vmatprep.subr.bf16.mxu0 0
      %427 = vmatpush1.bf16.msra.mxu0 0
      %428 = vmatprep.mubr.bf16.mxu0 0
      %429 = vmatmul.mubr.bf16.gmra.mrb[0].mxu0 %v385
      %v430 = vpop.f32.mrb[0].mxu0
      %v431 = vadd.f32 0.0, %v430
      %v432 = vpop.f32.mrb[0].mxu0
      %v433 = vpop.f32.mrb[0].mxu0
      %v434 = vadd.f32 0.0, %v433
      %v435 = vpop.f32.mrb[0].mxu0
      %436 = vmatprep.mubr.bf16.mxu0 0
      %437 = vmatmul.mubr.bf16.gmra.mrb[0].mxu0 %v388
      %v438 = vpop.f32.mrb[0].mxu0
      %v439 = vadd.f32 0.0, %v438
      %v440 = vpop.f32.mrb[0].mxu0
      %v441 = vpop.f32.mrb[0].mxu0
      %v442 = vadd.f32 0.0, %v441
      %v443 = vpop.f32.mrb[0].mxu0
      %444 = vmatprep.mubr.bf16.mxu0 0
      %445 = vmatmul.mubr.bf16.gmra.mrb[0].mxu0 %v391
      %v446 = vpop.f32.mrb[0].mxu0
      %v447 = vadd.f32 0.0, %v446
      %v448 = vpop.f32.mrb[0].mxu0
      %v449 = vpop.f32.mrb[0].mxu0
      %v450 = vadd.f32 0.0, %v449
      %v451 = vpop.f32.mrb[0].mxu0
      %452 = vmatprep.mubr.bf16.mxu0 0
      %453 = vmatmul.mubr.bf16.gmra.mrb[0].mxu0 %v394
      %v454 = vpop.f32.mrb[0].mxu0
      %v455 = vadd.f32 0.0, %v454
      %v456 = vpop.f32.mrb[0].mxu0
      %v457 = vpop.f32.mrb[0].mxu0
      %v458 = vadd.f32 0.0, %v457
      %v459 = vpop.f32.mrb[0].mxu0
      %460 = vdwg.mxu0
      %v461 = vld [vmem:[%s276] sm:$0xf]
      %v462 = vld [vmem:[%s276 + $0x4] sm:$0xf]
      %v463 = vld [vmem:[%s276 + $0x8] sm:$0xf]
      %v464 = vld [vmem:[%s276 + $0xc] sm:$0xf]
      %v465 = vld [vmem:[%s276 + $0x10] sm:$0xf]
      %v466 = vld [vmem:[%s276 + $0x14] sm:$0xf]
      %v467 = vld [vmem:[%s276 + $0x18] sm:$0xf]
      %v468 = vld [vmem:[%s276 + $0x1c] sm:$0xf]
      %v469 = vld [vmem:[%s276 + $0x20] sm:$0xf]
      %v470 = vld [vmem:[%s276 + $0x24] sm:$0xf]
      %v471 = vld [vmem:[%s276 + $0x28] sm:$0xf]
      %v472 = vld [vmem:[%s276 + $0x2c] sm:$0xf]
      %v473 = vld [vmem:[%s276 + $0x30] sm:$0xf]
      %v474 = vld [vmem:[%s276 + $0x34] sm:$0xf]
      %v475 = vld [vmem:[%s276 + $0x38] sm:$0xf]
      %v476 = vld [vmem:[%s276 + $0x3c] sm:$0xf]
      %v477 = vpack.c.bf16 %v434, %v431
      %v478 = vpack.c.bf16 %v442, %v439
      %v479 = vpack.c.bf16 %v450, %v447
      %v480 = vpack.c.bf16 %v458, %v455
      %s481 = scalar_lea.vmem %s276, 64
      %v482 = vld [vmem:[%s481] sm:$0xf]
      %v483 = vld [vmem:[%s481 + $0x4] sm:$0xf]
      %v484 = vld [vmem:[%s481 + $0x8] sm:$0xf]
      %v485 = vld [vmem:[%s481 + $0xc] sm:$0xf]
      %v486 = vld [vmem:[%s481 + $0x10] sm:$0xf]
      %v487 = vld [vmem:[%s481 + $0x14] sm:$0xf]
      %v488 = vld [vmem:[%s481 + $0x18] sm:$0xf]
      %v489 = vld [vmem:[%s481 + $0x1c] sm:$0xf]
      %v490 = vld [vmem:[%s481 + $0x20] sm:$0xf]
      %v491 = vld [vmem:[%s481 + $0x24] sm:$0xf]
      %v492 = vld [vmem:[%s481 + $0x28] sm:$0xf]
      %v493 = vld [vmem:[%s481 + $0x2c] sm:$0xf]
      %v494 = vld [vmem:[%s481 + $0x30] sm:$0xf]
      %v495 = vld [vmem:[%s481 + $0x34] sm:$0xf]
      %v496 = vld [vmem:[%s481 + $0x38] sm:$0xf]
      %v497 = vld [vmem:[%s481 + $0x3c] sm:$0xf]
      %v514 = vunpack.c.l.b16 %v482
      %v515 = vunpack.c.l.b16 %v483
      %v516 = vunpack.c.l.b16 %v484
      %v517 = vunpack.c.l.b16 %v485
      %v518 = vunpack.c.l.b16 %v486
      %v519 = vunpack.c.l.b16 %v487
      %v520 = vunpack.c.l.b16 %v488
      %v521 = vunpack.c.l.b16 %v489
      %v522 = vunpack.c.l.b16 %v490
      %v523 = vunpack.c.l.b16 %v491
      %v524 = vunpack.c.l.b16 %v492
      %v525 = vunpack.c.l.b16 %v493
      %v526 = vunpack.c.l.b16 %v494
      %v527 = vunpack.c.l.b16 %v495
      %v528 = vunpack.c.l.b16 %v496
      %v529 = vunpack.c.l.b16 %v497
      %v530 = vpack.c.b16 %v515, %v514
      %v531 = vpack.c.b16 %v517, %v516
      %v532 = vpack.c.b16 %v519, %v518
      %v533 = vpack.c.b16 %v521, %v520
      %v534 = vpack.c.b16 %v523, %v522
      %v535 = vpack.c.b16 %v525, %v524
      %v536 = vpack.c.b16 %v527, %v526
      %v537 = vpack.c.b16 %v529, %v528
      %546 = vmatprep.subr.bf16.mxu0 0
      %547 = vmatpush1.bf16.msra.mxu0 %v530
      %548 = vmatprep.subr.bf16.mxu0 0
      %549 = vmatpush1.bf16.msra.mxu0 %v531
      %550 = vmatprep.subr.bf16.mxu0 0
      %551 = vmatpush1.bf16.msra.mxu0 %v532
      %552 = vmatprep.subr.bf16.mxu0 0
      %553 = vmatpush1.bf16.msra.mxu0 %v533
      %554 = vmatprep.subr.bf16.mxu0 0
      %555 = vmatpush1.bf16.msra.mxu0 %v534
      %556 = vmatprep.subr.bf16.mxu0 0
      %557 = vmatpush1.bf16.msra.mxu0 %v535
      %558 = vmatprep.subr.bf16.mxu0 0
      %559 = vmatpush1.bf16.msra.mxu0 %v536
      %560 = vmatprep.subr.bf16.mxu0 0
      %561 = vmatpush1.bf16.msra.mxu0 %v537
      %562 = vmatprep.subr.bf16.mxu0 0
      %563 = vmatpush1.bf16.msra.mxu0 0
      %564 = vmatprep.subr.bf16.mxu0 0
      %565 = vmatpush1.bf16.msra.mxu0 0
      %566 = vmatprep.subr.bf16.mxu0 0
      %567 = vmatpush1.bf16.msra.mxu0 0
      %568 = vmatprep.subr.bf16.mxu0 0
      %569 = vmatpush1.bf16.msra.mxu0 0
      %570 = vmatprep.subr.bf16.mxu0 0
      %571 = vmatpush1.bf16.msra.mxu0 0
      %572 = vmatprep.subr.bf16.mxu0 0
      %573 = vmatpush1.bf16.msra.mxu0 0
      %574 = vmatprep.subr.bf16.mxu0 0
      %575 = vmatpush1.bf16.msra.mxu0 0
      %576 = vmatprep.subr.bf16.mxu0 0
      %577 = vmatpush1.bf16.msra.mxu0 0
      %578 = vmatprep.mubr.bf16.mxu0 0
      %579 = vmatmul.mubr.bf16.gmra.mrb[0].mxu0 %v477
      %v580 = vpop.f32.mrb[0].mxu0
      %v581 = vadd.f32 0.0, %v580
      %v582 = vpop.f32.mrb[0].mxu0
      %v583 = vpop.f32.mrb[0].mxu0
      %v584 = vadd.f32 0.0, %v583
      %v585 = vpop.f32.mrb[0].mxu0
      %586 = vmatprep.mubr.bf16.mxu0 0
      %587 = vmatmul.mubr.bf16.gmra.mrb[0].mxu0 %v478
      %v588 = vpop.f32.mrb[0].mxu0
      %v589 = vadd.f32 0.0, %v588
      %v590 = vpop.f32.mrb[0].mxu0
      %v591 = vpop.f32.mrb[0].mxu0
      %v592 = vadd.f32 0.0, %v591
      %v593 = vpop.f32.mrb[0].mxu0
      %594 = vmatprep.mubr.bf16.mxu0 0
      %595 = vmatmul.mubr.bf16.gmra.mrb[0].mxu0 %v479
      %v596 = vpop.f32.mrb[0].mxu0
      %v597 = vadd.f32 0.0, %v596
      %v598 = vpop.f32.mrb[0].mxu0
      %v599 = vpop.f32.mrb[0].mxu0
      %v600 = vadd.f32 0.0, %v599
      %v601 = vpop.f32.mrb[0].mxu0
      %602 = vmatprep.mubr.bf16.mxu0 0
      %603 = vmatmul.mubr.bf16.gmra.mrb[0].mxu0 %v480
      %v604 = vpop.f32.mrb[0].mxu0
      %v605 = vadd.f32 0.0, %v604
      %v606 = vpop.f32.mrb[0].mxu0
      %v607 = vpop.f32.mrb[0].mxu0
      %v608 = vadd.f32 0.0, %v607
      %v609 = vpop.f32.mrb[0].mxu0
      %610 = vdwg.mxu0
      %v627 = vunpack.c.l.b16 %v461
      %v628 = vunpack.c.l.b16 %v462
      %v629 = vunpack.c.l.b16 %v463
      %v630 = vunpack.c.l.b16 %v464
      %v631 = vunpack.c.l.b16 %v465
      %v632 = vunpack.c.l.b16 %v466
      %v633 = vunpack.c.l.b16 %v467
      %v634 = vunpack.c.l.b16 %v468
      %v635 = vunpack.c.l.b16 %v469
      %v636 = vunpack.c.l.b16 %v470
      %v637 = vunpack.c.l.b16 %v471
      %v638 = vunpack.c.l.b16 %v472
      %v639 = vunpack.c.l.b16 %v473
      %v640 = vunpack.c.l.b16 %v474
      %v641 = vunpack.c.l.b16 %v475
      %v642 = vunpack.c.l.b16 %v476
      %v643 = vpack.c.b16 %v628, %v627
      %v644 = vpack.c.b16 %v630, %v629
      %v645 = vpack.c.b16 %v632, %v631
      %v646 = vpack.c.b16 %v634, %v633
      %v647 = vpack.c.b16 %v636, %v635
      %v648 = vpack.c.b16 %v638, %v637
      %v649 = vpack.c.b16 %v640, %v639
      %v650 = vpack.c.b16 %v642, %v641
      %659 = vmatprep.subr.bf16.mxu0 0
      %660 = vmatpush1.bf16.msra.mxu0 %v643
      %661 = vmatprep.subr.bf16.mxu0 0
      %662 = vmatpush1.bf16.msra.mxu0 %v644
      %663 = vmatprep.subr.bf16.mxu0 0
      %664 = vmatpush1.bf16.msra.mxu0 %v645
      %665 = vmatprep.subr.bf16.mxu0 0
      %666 = vmatpush1.bf16.msra.mxu0 %v646
      %667 = vmatprep.subr.bf16.mxu0 0
      %668 = vmatpush1.bf16.msra.mxu0 %v647
      %669 = vmatprep.subr.bf16.mxu0 0
      %670 = vmatpush1.bf16.msra.mxu0 %v648
      %671 = vmatprep.subr.bf16.mxu0 0
      %672 = vmatpush1.bf16.msra.mxu0 %v649
      %673 = vmatprep.subr.bf16.mxu0 0
      %674 = vmatpush1.bf16.msra.mxu0 %v650
      %675 = vmatprep.subr.bf16.mxu0 0
      %676 = vmatpush1.bf16.msra.mxu0 0
      %677 = vmatprep.subr.bf16.mxu0 0
      %678 = vmatpush1.bf16.msra.mxu0 0
      %679 = vmatprep.subr.bf16.mxu0 0
      %680 = vmatpush1.bf16.msra.mxu0 0
      %681 = vmatprep.subr.bf16.mxu0 0
      %682 = vmatpush1.bf16.msra.mxu0 0
      %683 = vmatprep.subr.bf16.mxu0 0
      %684 = vmatpush1.bf16.msra.mxu0 0
      %685 = vmatprep.subr.bf16.mxu0 0
      %686 = vmatpush1.bf16.msra.mxu0 0
      %687 = vmatprep.subr.bf16.mxu0 0
      %688 = vmatpush1.bf16.msra.mxu0 0
      %689 = vmatprep.subr.bf16.mxu0 0
      %690 = vmatpush1.bf16.msra.mxu0 0
      %691 = vmatprep.mubr.bf16.mxu0 0
      %692 = vmatmul.mubr.bf16.gmra.mrb[0].mxu0 %v351
      %v693 = vpop.f32.mrb[0].mxu0
      %v694 = vadd.f32 %v581, %v693
      %v695 = vpop.f32.mrb[0].mxu0
      %v696 = vpop.f32.mrb[0].mxu0
      %v697 = vadd.f32 %v584, %v696
      %v698 = vpop.f32.mrb[0].mxu0
      %699 = vmatprep.mubr.bf16.mxu0 0
      %700 = vmatmul.mubr.bf16.gmra.mrb[0].mxu0 %v352
      %v701 = vpop.f32.mrb[0].mxu0
      %v702 = vadd.f32 %v589, %v701
      %v703 = vpop.f32.mrb[0].mxu0
      %v704 = vpop.f32.mrb[0].mxu0
      %v705 = vadd.f32 %v592, %v704
      %v706 = vpop.f32.mrb[0].mxu0
      %707 = vmatprep.mubr.bf16.mxu0 0
      %708 = vmatmul.mubr.bf16.gmra.mrb[0].mxu0 %v353
      %v709 = vpop.f32.mrb[0].mxu0
      %v710 = vadd.f32 %v597, %v709
      %v711 = vpop.f32.mrb[0].mxu0
      %v712 = vpop.f32.mrb[0].mxu0
      %v713 = vadd.f32 %v600, %v712
      %v714 = vpop.f32.mrb[0].mxu0
      %715 = vmatprep.mubr.bf16.mxu0 0
      %716 = vmatmul.mubr.bf16.gmra.mrb[0].mxu0 %v354
      %v717 = vpop.f32.mrb[0].mxu0
      %v718 = vadd.f32 %v605, %v717
      %v719 = vpop.f32.mrb[0].mxu0
      %v720 = vpop.f32.mrb[0].mxu0
      %v721 = vadd.f32 %v608, %v720
      %v722 = vpop.f32.mrb[0].mxu0
      %723 = vdwg.mxu0
      %p724 = scmp.eq.s32.totalorder %s20, 2
      // Predicated region
      $region45: #{sage_forward.1} parent=39 // pred_check
        %p725 = pneg %p724
      $region46: #{sage_forward.1} parent=39 // pred_check_branch
        %727 = sbr.rel (%p725) target = $region48
      $region47: #{sage_forward.1} parent=39 // pred_region
        %v728 = vld [vmem:[%s4] sm:$0x1]
        %v730 = vlaneseq
        %v731 = vshrl.u32 %v730, 7
        %v732 = vsub.s32 0, %v731
        %v733 = vrot.slane %v728, %v732
        %v735 = vadd.f32 %v694, %v733
        %v736 = vadd.f32 %v697, %v733
        %v737 = vadd.f32 %v702, %v733
        %v738 = vadd.f32 %v705, %v733
        %v739 = vadd.f32 %v710, %v733
        %v740 = vadd.f32 %v713, %v733
        %v741 = vadd.f32 %v718, %v733
        %v742 = vadd.f32 %v721, %v733
        %743 = vst [vmem:[%s289] sm:$0xff] %v735
        %744 = vst [vmem:[%s289 + $0x8] sm:$0xff] %v736
        %745 = vst [vmem:[%s289 + $0x10] sm:$0xff] %v737
        %746 = vst [vmem:[%s289 + $0x18] sm:$0xff] %v738
        %747 = vst [vmem:[%s289 + $0x20] sm:$0xff] %v739
        %748 = vst [vmem:[%s289 + $0x28] sm:$0xff] %v740
        %749 = vst [vmem:[%s289 + $0x30] sm:$0xff] %v741
        %750 = vst [vmem:[%s289 + $0x38] sm:$0xff] %v742
      $region48: #{sage_forward.1} parent=39 // pred_fallthru
        _
      %p751 = scmp.lt.s32.totalorder %s20, 2
      // Predicated region
      $region49: #{sage_forward.1} parent=39 // pred_check
        %p752 = pneg %p751
      $region50: #{sage_forward.1} parent=39 // pred_check_branch
        %754 = sbr.rel (%p752) target = $region52
      $region51: #{sage_forward.1} parent=39 // pred_region
        %s755 = smul.u32 %s304, 64
        %s756 = scalar_lea.vmem [#allocation2], %s755
        %s757 = scalar_lea.vmem %s756, %s327 [#allocation2]
        %758 = vst [vmem:[%s757] sm:$0xff] %v694
        %759 = vst [vmem:[%s757 + $0x8] sm:$0xff] %v697
        %760 = vst [vmem:[%s757 + $0x10] sm:$0xff] %v702
        %761 = vst [vmem:[%s757 + $0x18] sm:$0xff] %v705
        %762 = vst [vmem:[%s757 + $0x20] sm:$0xff] %v710
        %763 = vst [vmem:[%s757 + $0x28] sm:$0xff] %v713
        %764 = vst [vmem:[%s757 + $0x30] sm:$0xff] %v718
        %765 = vst [vmem:[%s757 + $0x38] sm:$0xff] %v721
        // Predicated region
        $region53: #{sage_forward.1} parent=51 // pred_check
          %p766 = pneg %p306
        $region54: #{sage_forward.1} parent=51 // pred_check_branch
          %768 = sbr.rel (%p766) target = $region56
        $region55: #{sage_forward.1} parent=51 // pred_region
          %v769 = vld [vmem:[%s756] sm:$0xff]
          %v770 = vld [vmem:[%s756 + $0x8] sm:$0xff]
          %v771 = vld [vmem:[%s756 + $0x10] sm:$0xff]
          %v772 = vld [vmem:[%s756 + $0x18] sm:$0xff]
          %v773 = vld [vmem:[%s756 + $0x20] sm:$0xff]
          %v774 = vld [vmem:[%s756 + $0x28] sm:$0xff]
          %v775 = vld [vmem:[%s756 + $0x30] sm:$0xff]
          %v776 = vld [vmem:[%s756 + $0x38] sm:$0xff]
          %v777 = vadd.f32 %v769, %v770
          %v778 = vadd.f32 %v777, %v771
          %v779 = vadd.f32 %v778, %v772
          %v780 = vadd.f32 %v779, %v773
          %v781 = vadd.f32 %v780, %v774
          %v782 = vadd.f32 %v781, %v775
          %v783 = vadd.f32 %v782, %v776
          %v784 = vrot.slane %v783, 4
          %v785 = vadd.f32 %v783, %v784
          %v786 = vrot.slane %v785, 2
          %v787 = vadd.f32 %v785, %v786
          %v788 = vrot.slane %v787, 1
          %v789 = vadd.f32 %v787, %v788
          %v790 = vmul.f32 %v789, 0.015625
          %v791 = vmul.f32 %v769, %v769
          %v792 = vmul.f32 %v770, %v770
          %v793 = vmul.f32 %v771, %v771
          %v794 = vmul.f32 %v772, %v772
          %v795 = vmul.f32 %v773, %v773
          %v796 = vmul.f32 %v774, %v774
          %v797 = vmul.f32 %v775, %v775
          %v798 = vmul.f32 %v776, %v776
          %v799 = vadd.f32 %v791, %v792
          %v800 = vadd.f32 %v799, %v793
          %v801 = vadd.f32 %v800, %v794
          %v802 = vadd.f32 %v801, %v795
          %v803 = vadd.f32 %v802, %v796
          %v804 = vadd.f32 %v803, %v797
          %v805 = vadd.f32 %v804, %v798
          %v806 = vrot.slane %v805, 4
          %v807 = vadd.f32 %v805, %v806
          %v808 = vrot.slane %v807, 2
          %v809 = vadd.f32 %v807, %v808
          %v810 = vrot.slane %v809, 1
          %v811 = vadd.f32 %v809, %v810
          %v812 = vmul.f32 %v811, 0.015625
          %v813 = vmul.f32 %v790, %v790
          %v814 = vsub.f32 %v812, %v813
          %v815 = vsub.f32 %v769, %v790
          %v816 = vsub.f32 %v770, %v790
          %v817 = vsub.f32 %v771, %v790
          %v818 = vsub.f32 %v772, %v790
          %v819 = vsub.f32 %v773, %v790
          %v820 = vsub.f32 %v774, %v790
          %v821 = vsub.f32 %v775, %v790
          %v822 = vsub.f32 %v776, %v790
          %v823 = vadd.f32 %v814, 1e-05
          %v824 = vrsqrt.pop %v823
          %v825 = vmul.f32 %v815, %v824
          %v826 = vmul.f32 %v816, %v824
          %v827 = vmul.f32 %v817, %v824
          %v828 = vmul.f32 %v818, %v824
          %v829 = vmul.f32 %v819, %v824
          %v830 = vmul.f32 %v820, %v824
          %v831 = vmul.f32 %v821, %v824
          %v832 = vmul.f32 %v822, %v824
          %v833 = vld [vmem:[%s282] sm:$0x1]
          %v834 = vlaneseq
          %v835 = vshrl.u32 %v834, 7
          %v836 = vsub.s32 0, %v835
          %v837 = vrot.slane %v833, %v836
          %v838 = vmul.f32 %v825, %v837
          %v839 = vmul.f32 %v826, %v837
          %v840 = vmul.f32 %v827, %v837
          %v841 = vmul.f32 %v828, %v837
          %v842 = vmul.f32 %v829, %v837
          %v843 = vmul.f32 %v830, %v837
          %v844 = vmul.f32 %v831, %v837
          %v845 = vmul.f32 %v832, %v837
          %v846 = vld [vmem:[%s282 + $0x1] sm:$0x1]
          %v847 = vlaneseq
          %v848 = vshrl.u32 %v847, 7
          %v849 = vsub.s32 0, %v848
          %v850 = vrot.slane %v846, %v849
          %v851 = vadd.f32 %v838, %v850
          %v852 = vadd.f32 %v839, %v850
          %v853 = vadd.f32 %v840, %v850
          %v854 = vadd.f32 %v841, %v850
          %v855 = vadd.f32 %v842, %v850
          %v856 = vadd.f32 %v843, %v850
          %v857 = vadd.f32 %v844, %v850
          %v858 = vadd.f32 %v845, %v850
          %v859 = vmax.f32 %v851, 0.0
          %v860 = vmax.f32 %v852, 0.0
          %v861 = vmax.f32 %v853, 0.0
          %v862 = vmax.f32 %v854, 0.0
          %v863 = vmax.f32 %v855, 0.0
          %v864 = vmax.f32 %v856, 0.0
          %v865 = vmax.f32 %v857, 0.0
          %v866 = vmax.f32 %v858, 0.0
          %v867 = vlaneseq
          %v868 = vshrl.u32 %v867, 7
          %v869 = vadd.s32 %v868, 8
          %v870 = vadd.s32 %v868, 16
          %v871 = vadd.s32 %v868, 24
          %v872 = vadd.s32 %v868, 32
          %v873 = vadd.s32 %v868, 40
          %v874 = vadd.s32 %v868, 48
          %v875 = vadd.s32 %v868, 56
          %vm876 = vcmp.lt.s32.totalorder %v868, 64
          %vm877 = vcmp.lt.s32.totalorder %v869, 64
          %vm878 = vcmp.lt.s32.totalorder %v870, 64
          %vm879 = vcmp.lt.s32.totalorder %v871, 64
          %vm880 = vcmp.lt.s32.totalorder %v872, 64
          %vm881 = vcmp.lt.s32.totalorder %v873, 64
          %vm882 = vcmp.lt.s32.totalorder %v874, 64
          %vm883 = vcmp.lt.s32.totalorder %v875, 64
          %v884 = vsel %vm876, 1, 0
          %v885 = vsel %vm877, 1, 0
          %v886 = vsel %vm878, 1, 0
          %v887 = vsel %vm879, 1, 0
          %v888 = vsel %vm880, 1, 0
          %v889 = vsel %vm881, 1, 0
          %v890 = vsel %vm882, 1, 0
          %v891 = vsel %vm883, 1, 0
          %vm892 = vcmp.eq.s32.totalorder %v884, 1
          %vm893 = vcmp.eq.s32.totalorder %v885, 1
          %vm894 = vcmp.eq.s32.totalorder %v886, 1
          %vm895 = vcmp.eq.s32.totalorder %v887, 1
          %vm896 = vcmp.eq.s32.totalorder %v888, 1
          %vm897 = vcmp.eq.s32.totalorder %v889, 1
          %vm898 = vcmp.eq.s32.totalorder %v890, 1
          %vm899 = vcmp.eq.s32.totalorder %v891, 1
          %v900 = vsel %vm892, %v859, 0.0
          %v901 = vsel %vm893, %v860, 0.0
          %v902 = vsel %vm894, %v861, 0.0
          %v903 = vsel %vm895, %v862, 0.0
          %v904 = vsel %vm896, %v863, 0.0
          %v905 = vsel %vm897, %v864, 0.0
          %v906 = vsel %vm898, %v865, 0.0
          %v907 = vsel %vm899, %v866, 0.0
          %908 = vst [vmem:[%s756] sm:$0xff] %v900
          %909 = vst [vmem:[%s756 + $0x8] sm:$0xff] %v901
          %910 = vst [vmem:[%s756 + $0x10] sm:$0xff] %v902
          %911 = vst [vmem:[%s756 + $0x18] sm:$0xff] %v903
          %912 = vst [vmem:[%s756 + $0x20] sm:$0xff] %v904
          %913 = vst [vmem:[%s756 + $0x28] sm:$0xff] %v905
          %914 = vst [vmem:[%s756 + $0x30] sm:$0xff] %v906
          %915 = vst [vmem:[%s756 + $0x38] sm:$0xff] %v907
        $region56: #{sage_forward.1} parent=51 // pred_fallthru
          _
      $region52: #{sage_forward.1} parent=39 // pred_fallthru
        _
      %s916 = smul.u32 8, %s21
      %p917 = scmp.lt.s32.totalorder %s916, 7
      %s918 = scalar_select %p917, %s916, 7
      %s919 = smul.addr %s918, 8
      %s920 = scalar_lea.vmem %s5, %s919
      // Predicated region
      $region57: #{sage_forward.1} parent=39 // pred_check
        %p921 = pneg %p170
      $region58: #{sage_forward.1} parent=39 // pred_check_branch
        %923 = sbr.rel (%p921) target = $region60
      $region59: #{sage_forward.1} parent=39 // pred_region
        %s924 = smul.u32 8, %s21
      $region60: #{sage_forward.1} parent=39 // pred_fallthru
        _
      // Predicated region
      $region61: #{sage_forward.1} parent=39 // pred_check
        %p925 = pneg %p170
      $region62: #{sage_forward.1} parent=39 // pred_check_branch
        %927 = sbr.rel (%p925) target = $region64
      $region63: #{sage_forward.1} parent=39 // pred_region
        %s928 = smul.u32 8, %s21
        %p929 = scmp.lt.s32.totalorder %s928, 7
        %s930 = scalar_select %p929, %s928, 7
        %s931 = smul.addr %s930, 8
        %s932 = scalar_lea.vmem %s5, %s931
      $region64: #{sage_forward.1} parent=39 // pred_fallthru
        _
    $region40: #{sage_forward.1} parent=5 // pred_fallthru
      _
    %p933 = scmp.le.s32.totalorder 2, %s11
    // Predicated region
    $region65: #{sage_forward.1} parent=5 // pred_check
      %p934 = pneg %p933
    $region66: #{sage_forward.1} parent=5 // pred_check_branch
      %936 = sbr.rel (%p934) target = $region68
    $region67: #{sage_forward.1} parent=5 // pred_region
      %s937 = ssub.s32 %s11, 2
    $region68: #{sage_forward.1} parent=5 // pred_fallthru
      _
  $region6: #{sage_forward.1} parent=0 // loop_footer
    %s15 = sadd.s32 1, %s11
  $region7: #{sage_forward.1} parent=0 // loop_footer_branch
    %10 = sbr.rel target = $region3
  $region8: #{sage_forward.1} parent=0 // loop_exit
    _

</llo_original>
